<compile_context>
chip_gen: v5e
topology: v5e:2x2
jax: 0.10.0
libtpu: 0.0.40
codegen_flags: <defaults>
</compile_context>

<pallas_src>
import jax
import jax.numpy as jnp
from jax.experimental import pallas as pl
from jax.experimental.pallas import tpu as pltpu


def _round_up(x, m):
    return (x + m - 1) // m * m


def _sublane_multiple(dtype):
    # Packed dtypes tile the second-to-last dim in multiples of 32/itemsize.
    itemsize = jnp.dtype(dtype).itemsize
    return max(8, 32 // itemsize)  # 8 for f32, 16 for bf16, 32 for int8/fp8


def _lora_kernel(x_ref, wt_ref, bias_ref, xa_ref, b_ref, o_ref, acc_ref):
    # x_ref:    (tm, tk)
    # wt_ref:   (tk, tn)       -- frozen W pre-transposed to (in, out)
    # bias_ref: (1, tn)
    # xa_ref:   (tm, rank) f32 -- precomputed alpha * (x @ A), k/j-invariant
    # b_ref:    (rank, tn)
    # o_ref:    (tm, tn)
    # acc_ref:  (tm, tn) f32   -- base matmul accumulator
    k = pl.program_id(2)

    @pl.when(k == 0)
    def _init():
        acc_ref[...] = jnp.zeros_like(acc_ref)

    # Base: plain (m,k)x(k,n) contraction on the MXU (no transposed RHS).
    acc_ref[...] += jnp.dot(x_ref[...], wt_ref[...],
                            preferred_element_type=jnp.float32)

    @pl.when(k == pl.num_programs(2) - 1)
    def _epilogue():
        # LoRA second stage: tiny (tm, rank) @ (rank, tn), once per output tile.
        lora = jnp.dot(xa_ref[...].astype(b_ref.dtype), b_ref[...],
                       preferred_element_type=jnp.float32)
        o_ref[...] = (acc_ref[...] + bias_ref[...] + lora).astype(o_ref.dtype)
        # TODO(synk): nn.Dropout(lora_dropout) with p=0.0 is the identity;
        # training-mode dropout would need pltpu.prng_* masking of `lora` here.


def prepare_lora_frozen_params(W, bias, B, *, tn=512, tk=1024):
    """One-time (parameter-load-time) prep of the FROZEN operands.

    Transposes W to (in, out) and pads W / bias / B to tile multiples so the
    per-call path never touches the big weight outside the kernel.
    """
    out_features, in_features = W.shape
    tn = min(tn, _round_up(out_features, 128))
    tk = min(tk, _round_up(in_features, 128))
    Np = _round_up(out_features, tn)
    Kp = _round_up(in_features, tk)

    Wt = W.T  # (in, out): one-time cost, W is frozen in LoRA.
    if (Kp, Np) != (in_features, out_features):
        Wt = jnp.pad(Wt, ((0, Kp - in_features), (0, Np - out_features)))

    bias2d = bias.reshape(1, out_features)
    if Np != out_features:
        bias2d = jnp.pad(bias2d, ((0, 0), (0, Np - out_features)))

    Bp = B if Np == out_features else jnp.pad(B, ((0, 0), (0, Np - out_features)))

    return {
        "Wt": Wt, "bias2d": bias2d, "B": Bp,
        "tn": tn, "tk": tk,
        "in_features": in_features, "out_features": out_features,
    }


def lora_linear_apply(x, A, alpha, params, *, tm=512):
    """x: (..., in). A: (in, rank). params from prepare_lora_frozen_params."""
    Wt, bias2d, Bp = params["Wt"], params["bias2d"], params["B"]
    tn, tk = params["tn"], params["tk"]
    in_features = params["in_features"]
    out_features = params["out_features"]
    Kp, Np = Wt.shape
    rank = A.shape[1]
    lead_shape = x.shape[:-1]

    x2d = x.reshape(-1, in_features)
    M = x2d.shape[0]

    # LoRA first stage computed ONCE per call (M x K x rank, ~rank/N of total
    # flops); alpha folded into this tiny f32 intermediate, not the (M, N) tile.
    xa = alpha * jnp.dot(x2d, A, preferred_element_type=jnp.float32)

    sub = _sublane_multiple(x.dtype)
    tm = min(tm, _round_up(M, sub))
    Mp = _round_up(M, tm)

    # Only the activations are padded per call (no-op when already aligned).
    if (Mp, Kp) != (M, in_features):
        x2d = jnp.pad(x2d, ((0, Mp - M), (0, Kp - in_features)))
    if Mp != M:
        xa = jnp.pad(xa, ((0, Mp - M), (0, 0)))

    grid = (pl.cdiv(Mp, tm), pl.cdiv(Np, tn), pl.cdiv(Kp, tk))

    itemsize = jnp.dtype(x.dtype).itemsize
    w_isz = jnp.dtype(Wt.dtype).itemsize
    b_isz = jnp.dtype(Bp.dtype).itemsize
    # Double-buffered VMEM footprint + f32 accumulator, with headroom.  Floored
    # at 16 MiB, capped at 48 MiB (safe on v7x's 64 MiB VMEM; well under
    # v5e/v6e's 128 MiB).
    footprint = (2 * tm * tk * itemsize + 2 * tk * tn * w_isz
                 + 2 * tn * max(b_isz, 4) + 2 * tm * rank * 4
                 + 2 * rank * tn * b_isz + 2 * tm * tn * itemsize
                 + tm * tn * 4)
    vmem_limit = min(max(int(footprint * 1.5) + (2 << 20), 16 << 20), 48 << 20)

    cost = pl.CostEstimate(
        flops=2 * M * out_features * in_features        # base matmul
        + 2 * M * rank * out_features,                   # (x@A) @ B
        transcendentals=0,
        bytes_accessed=(M * in_features + in_features * out_features
                        + out_features + rank * out_features
                        + M * out_features) * itemsize + M * rank * 4,
    )

    out = pl.pallas_call(
        _lora_kernel,
        out_shape=jax.ShapeDtypeStruct((Mp, Np), x.dtype),
        grid_spec=pltpu.PrefetchScalarGridSpec(
            num_scalar_prefetch=0,
            grid=grid,
            in_specs=[
                pl.BlockSpec((tm, tk), lambda i, j, k: (i, k)),    # x
                pl.BlockSpec((tk, tn), lambda i, j, k: (k, j)),    # W.T (in, out)
                pl.BlockSpec((1, tn), lambda i, j, k: (0, j)),     # bias
                pl.BlockSpec((tm, rank), lambda i, j, k: (i, 0)),  # alpha * (x@A)
                pl.BlockSpec((rank, tn), lambda i, j, k: (0, j)),  # B
            ],
            out_specs=pl.BlockSpec((tm, tn), lambda i, j, k: (i, j)),
            scratch_shapes=[pltpu.VMEM((tm, tn), jnp.float32)],
        ),
        compiler_params=pltpu.CompilerParams(
            dimension_semantics=("parallel", "parallel", "arbitrary"),
            vmem_limit_bytes=vmem_limit),
        cost_estimate=cost,
    )(x2d, Wt, bias2d, xa, Bp)

    out = out[:M, :out_features]
    return out.reshape(*lead_shape, out_features)


def lora_linear(x, W, bias, A, B, alpha, *, tm=512, tn=512, tk=1024):
    """Convenience wrapper.  In production, call prepare_lora_frozen_params
    ONCE at parameter-load time (W/bias/B are frozen) and reuse `params`."""
    params = prepare_lora_frozen_params(W, bias, B, tn=tn, tk=tk)
    return lora_linear_apply(x, A, alpha, params, tm=tm)


if __name__ == "__main__":
    key = jax.random.PRNGKey(0)
    kx, kw, kb, ka, kb2 = jax.random.split(key, 5)

    # ---- aligned, decode-shaped case: (batch, seq, in) with LoRA rank 8 ----
    batch, seq = 2, 8
    in_features, out_features, rank = 256, 256, 8
    alpha = 2.0

    x = jax.random.normal(kx, (batch, seq, in_features), dtype=jnp.float32)
    W = jax.random.normal(kw, (out_features, in_features), dtype=jnp.float32) * 0.05
    bias = jax.random.normal(kb, (out_features,), dtype=jnp.float32) * 0.05
    std_dev = 1.0 / jnp.sqrt(jnp.float32(rank))
    A = jax.random.normal(ka, (in_features, rank), dtype=jnp.float32) * std_dev
    # The module initializes B = zeros; use a nonzero B so the LoRA path is
    # actually exercised by the numeric check.
    B = jax.random.normal(kb2, (rank, out_features), dtype=jnp.float32) * 0.1

    params = prepare_lora_frozen_params(W, bias, B)   # one-time frozen prep
    y = jax.block_until_ready(lora_linear_apply(x, A, alpha, params))

    y_ref = x @ W.T + bias + alpha * ((x @ A) @ B)
    assert y.shape == (batch, seq, out_features)
    assert jnp.allclose(y, y_ref, atol=1e-4, rtol=1e-4)

    # ---- unaligned case: exercises the padding path end-to-end ----
    kx2, kw2, kb3, ka2, kb4 = jax.random.split(key, 5)  # deterministic reuse
    in2, out2, rank2, M2, alpha2 = 200, 136, 4, 10, 1.5
    x2 = jax.random.normal(kx2, (M2, in2), dtype=jnp.float32)
    W2 = jax.random.normal(kw2, (out2, in2), dtype=jnp.float32) * 0.05
    b2 = jax.random.normal(kb3, (out2,), dtype=jnp.float32) * 0.05
    A2 = jax.random.normal(ka2, (in2, rank2), dtype=jnp.float32) * 0.5
    B2 = jax.random.normal(kb4, (rank2, out2), dtype=jnp.float32) * 0.1

    y2 = jax.block_until_ready(lora_linear(x2, W2, b2, A2, B2, alpha2))
    y2_ref = x2 @ W2.T + b2 + alpha2 * ((x2 @ A2) @ B2)
    assert y2.shape == (M2, out2)
    assert jnp.allclose(y2, y2_ref, atol=1e-4, rtol=1e-4)

    print("KERNEL_OK")
</pallas_src>

<mosaic_0001>
module attributes {stable_mosaic.version = 11 : i64} {
  func.func @_lora_kernel(%arg0: i32, %arg1: i32, %arg2: i32, %arg3: memref<16x256xf32, #tpu.memory_space<vmem>>, %arg4: memref<256x256xf32, #tpu.memory_space<vmem>>, %arg5: memref<1x256xf32, #tpu.memory_space<vmem>>, %arg6: memref<16x8xf32, #tpu.memory_space<vmem>>, %arg7: memref<8x256xf32, #tpu.memory_space<vmem>>, %arg8: memref<16x256xf32, #tpu.memory_space<vmem>>, %arg9: memref<16x256xf32, #tpu.memory_space<vmem>>) attributes {dimension_semantics = [#tpu.dimension_semantics<parallel>, #tpu.dimension_semantics<parallel>, #tpu.dimension_semantics<arbitrary>], iteration_bounds = array<i64: 1, 1, 1>, scalar_prefetch = 0 : i64, scratch_operands = 1 : i64, tpu.core_type = #tpu.core_type<tc>, window_params = [{transform_indices = @transform_0, window_bounds = array<i64: 16, 256>}, {transform_indices = @transform_1, window_bounds = array<i64: 256, 256>}, {transform_indices = @transform_2, window_bounds = array<i64: 1, 256>}, {transform_indices = @transform_3, window_bounds = array<i64: 16, 8>}, {transform_indices = @transform_4, window_bounds = array<i64: 8, 256>}, {transform_indices = @transform_5, window_bounds = array<i64: 16, 256>}]} {
    %c0_i32 = arith.constant 0 : i32
    %0 = arith.cmpi eq, %arg2, %c0_i32 : i32
    %1 = arith.extui %0 : i1 to i32
    %c0_i32_0 = arith.constant 0 : i32
    %2 = arith.cmpi ne, %1, %c0_i32_0 : i32
    scf.if %2 {
      %cst_10 = arith.constant 0.000000e+00 : f32
      %12 = vector.broadcast %cst_10 : f32 to vector<16x256xf32>
      %c0_11 = arith.constant 0 : index
      %c0_12 = arith.constant 0 : index
      %13 = vector.load %arg9[%c0_11, %c0_12] : memref<16x256xf32, #tpu.memory_space<vmem>>, vector<16x256xf32>
      tpu.vector_store %arg9[%c0_11, %c0_12], %12 {strides = array<i32>} : memref<16x256xf32, #tpu.memory_space<vmem>>, vector<16x256xf32>,
    } else {
    }
    %c0 = arith.constant 0 : index
    %c0_1 = arith.constant 0 : index
    %3 = vector.load %arg9[%c0, %c0_1] : memref<16x256xf32, #tpu.memory_space<vmem>>, vector<16x256xf32>
    %c0_2 = arith.constant 0 : index
    %c0_3 = arith.constant 0 : index
    %4 = vector.load %arg3[%c0_2, %c0_3] : memref<16x256xf32, #tpu.memory_space<vmem>>, vector<16x256xf32>
    %c0_4 = arith.constant 0 : index
    %c0_5 = arith.constant 0 : index
    %5 = vector.load %arg4[%c0_4, %c0_5] : memref<256x256xf32, #tpu.memory_space<vmem>>, vector<256x256xf32>
    %cst = arith.constant dense<0.000000e+00> : vector<16x256xf32>
    %6 = tpu.matmul %4, %5, %cst {dimension_numbers = #tpu.dot_dimension_numbers<[1], [0], [0], [1], [0, 0, 1, 1], [], []>} : vector<16x256xf32>, vector<256x256xf32>, vector<16x256xf32> -> vector<16x256xf32>
    %7 = arith.addf %3, %6 : vector<16x256xf32>
    %c0_6 = arith.constant 0 : index
    %c0_7 = arith.constant 0 : index
    %8 = vector.load %arg9[%c0_6, %c0_7] : memref<16x256xf32, #tpu.memory_space<vmem>>, vector<16x256xf32>
    tpu.vector_store %arg9[%c0_6, %c0_7], %7 {strides = array<i32>} : memref<16x256xf32, #tpu.memory_space<vmem>>, vector<16x256xf32>,
    %c0_i32_8 = arith.constant 0 : i32
    %9 = arith.cmpi eq, %arg2, %c0_i32_8 : i32
    %10 = arith.extui %9 : i1 to i32
    %c0_i32_9 = arith.constant 0 : i32
    %11 = arith.cmpi ne, %10, %c0_i32_9 : i32
    scf.if %11 {
      %c0_10 = arith.constant 0 : index
      %c0_11 = arith.constant 0 : index
      %12 = vector.load %arg6[%c0_10, %c0_11] : memref<16x8xf32, #tpu.memory_space<vmem>>, vector<16x8xf32>
      %c0_12 = arith.constant 0 : index
      %c0_13 = arith.constant 0 : index
      %13 = vector.load %arg7[%c0_12, %c0_13] : memref<8x256xf32, #tpu.memory_space<vmem>>, vector<8x256xf32>
      %cst_14 = arith.constant dense<0.000000e+00> : vector<16x256xf32>
      %14 = tpu.matmul %12, %13, %cst_14 {dimension_numbers = #tpu.dot_dimension_numbers<[1], [0], [0], [1], [0, 0, 1, 1], [], []>} : vector<16x8xf32>, vector<8x256xf32>, vector<16x256xf32> -> vector<16x256xf32>
      %c0_15 = arith.constant 0 : index
      %c0_16 = arith.constant 0 : index
      %15 = vector.load %arg9[%c0_15, %c0_16] : memref<16x256xf32, #tpu.memory_space<vmem>>, vector<16x256xf32>
      %c0_17 = arith.constant 0 : index
      %c0_18 = arith.constant 0 : index
      %16 = vector.load %arg5[%c0_17, %c0_18] : memref<1x256xf32, #tpu.memory_space<vmem>>, vector<1x256xf32>
      %17 = vector.broadcast %16 : vector<1x256xf32> to vector<16x256xf32>
      %18 = arith.addf %15, %17 : vector<16x256xf32>
      %19 = arith.addf %18, %14 : vector<16x256xf32>
      %c0_19 = arith.constant 0 : index
      %c0_20 = arith.constant 0 : index
      %20 = vector.load %arg8[%c0_19, %c0_20] : memref<16x256xf32, #tpu.memory_space<vmem>>, vector<16x256xf32>
      tpu.vector_store %arg8[%c0_19, %c0_20], %19 {strides = array<i32>} : memref<16x256xf32, #tpu.memory_space<vmem>>, vector<16x256xf32>,
    } else {
    }
    return
  }
  func.func @transform_0(%arg0: i32, %arg1: i32, %arg2: i32) -> (i32, i32) {
    %c0_i32 = arith.constant 0 : i32
    return %arg0, %arg2 : i32, i32
  }
  func.func @transform_1(%arg0: i32, %arg1: i32, %arg2: i32) -> (i32, i32) {
    %c0_i32 = arith.constant 0 : i32
    return %arg2, %arg1 : i32, i32
  }
  func.func @transform_2(%arg0: i32, %arg1: i32, %arg2: i32) -> (i32, i32) {
    %c0_i32 = arith.constant 0 : i32
    %c0_i32_0 = arith.constant 0 : i32
    return %c0_i32, %arg1 : i32, i32
  }
  func.func @transform_3(%arg0: i32, %arg1: i32, %arg2: i32) -> (i32, i32) {
    %c0_i32 = arith.constant 0 : i32
    %c0_i32_0 = arith.constant 0 : i32
    return %arg0, %c0_i32 : i32, i32
  }
  func.func @transform_4(%arg0: i32, %arg1: i32, %arg2: i32) -> (i32, i32) {
    %c0_i32 = arith.constant 0 : i32
    %c0_i32_0 = arith.constant 0 : i32
    return %c0_i32, %arg1 : i32, i32
  }
  func.func @transform_5(%arg0: i32, %arg1: i32, %arg2: i32) -> (i32, i32) {
    %c0_i32 = arith.constant 0 : i32
    return %arg0, %arg1 : i32, i32
  }
}

</mosaic_0001>

<llo_original>
// kernel: tpu_custom_call.1
$region0: #{tpu_custom_call.1}
  #allocation0 [shape = 'u32[]', space=smem, size = 0x4, offset = 0x4, fixed_abs, tag = 'smem constant byte address 0x4 - core index']
  #allocation1 [shape = 'u32[72,128]{1,0:T(1,128)}', space=vmem, size = 0x9000, scoped, tag = 'internal scratch']
  #allocation2 [shape = 'f32[16,256]{1,0:T(8,128)}', space=vmem, size = 0x4000, scoped, tag = 'scratch operand']
  %s0 = inlined_call_operand.hbm [shape: f32[16,256], index: 0, kind: input, shape index: {}]
  %s1 = inlined_call_operand.hbm [shape: f32[256,256], index: 1, kind: input, shape index: {}]
  %s2 = inlined_call_operand.vmem [shape: f32[1,256], index: 2, kind: input, shape index: {}]
  %s3 = inlined_call_operand.vmem [shape: f32[16,8], index: 3, kind: input, shape index: {}]
  %s4 = inlined_call_operand.vmem [shape: f32[8,256], index: 4, kind: input, shape index: {}]
  %s5 = inlined_call_operand.hbm [shape: f32[16,256], index: 5, kind: output, shape index: {}]
  %s6 = sld [smem:[#allocation0]]
  $region46: #{tpu_custom_call.1} parent=0
    _
  %s8 = ssub.s32 1, %s6
  %s9 = scalar_select 0, %s8, %s6
  $region1: #{tpu_custom_call.1} parent=0
    #allocation3 [shape = 'u8[16384]{0}', space=vmem, size = 0x4000, scoped, tag = 'input window, operand 0, single buffered']
    #allocation4 [shape = 's32[1]{0}', space=sflag, size = 0x4, scoped, tag = 'scoped memory for tpu_custom_call.1']
    #allocation5 [shape = 's32[1]{0}', space=sflag, size = 0x4, scoped, tag = 'scoped memory for tpu_custom_call.1']
    #allocation6 [shape = 'u8[262144]{0}', space=vmem, size = 0x40000, scoped, tag = 'input window, operand 1, single buffered']
    #allocation7 [shape = 's32[1]{0}', space=sflag, size = 0x4, scoped, tag = 'scoped memory for tpu_custom_call.1']
    #allocation8 [shape = 'u8[16384]{0}', space=vmem, size = 0x4000, scoped, tag = 'output window, operand 0, single buffered']
    %10 = vsyncpa [#allocation4], 0
    %11 = vsyncpa [#allocation7], 0
    %12 = vsyncpa [#allocation5], 0
    // Predicated region
    $region2: #{tpu_custom_call.1} parent=1 // pred_check
      _
    $region3: #{tpu_custom_call.1} parent=1 // pred_check_branch
      %14 = sbr.rel (0) target = $region5
    $region4: #{tpu_custom_call.1} parent=1 // pred_region
      %16 = vsyncadd [#allocation4], 0
      %s17 = sshll.u32 %s0, 4
      %s18 = int_to_ptr.hbm [resolvable:$true] %s17
      %s19 = sshll.u32 [#allocation3], 4
      %s20 = int_to_ptr.vmem [resolvable:$true] %s19
      %25 = dma.hbm_to_vmem [thread:$0]  %s18, 512, %s20, [#allocation4], 256, 256, 16
    $region5: #{tpu_custom_call.1} parent=1 // pred_fallthru
      _
    // Predicated region
    $region6: #{tpu_custom_call.1} parent=1 // pred_check
      _
    $region7: #{tpu_custom_call.1} parent=1 // pred_check_branch
      %27 = sbr.rel (0) target = $region9
    $region8: #{tpu_custom_call.1} parent=1 // pred_region
      %29 = vsyncadd [#allocation7], 0
      %s30 = sshll.u32 %s1, 4
      %s31 = int_to_ptr.hbm [resolvable:$true] %s30
      %s32 = sshll.u32 [#allocation6], 4
      %s33 = int_to_ptr.vmem [resolvable:$true] %s32
      %38 = dma.hbm_to_vmem [thread:$0]  %s31, 8192, %s33, [#allocation7], 256, 256, 16
    $region9: #{tpu_custom_call.1} parent=1 // pred_fallthru
      _
    // Predicated region
    $region10: #{tpu_custom_call.1} parent=1 // pred_check
      _
    $region11: #{tpu_custom_call.1} parent=1 // pred_check_branch
      %40 = sbr.rel (0) target = $region13
    $region12: #{tpu_custom_call.1} parent=1 // pred_region
      _
    $region13: #{tpu_custom_call.1} parent=1 // pred_fallthru
      _
    // Predicated region
    $region14: #{tpu_custom_call.1} parent=1 // pred_check
      _
    $region15: #{tpu_custom_call.1} parent=1 // pred_check_branch
      %42 = sbr.rel (0) target = $region17
    $region16: #{tpu_custom_call.1} parent=1 // pred_region
      _
    $region17: #{tpu_custom_call.1} parent=1 // pred_fallthru
      _
    // Predicated region
    $region18: #{tpu_custom_call.1} parent=1 // pred_check
      _
    $region19: #{tpu_custom_call.1} parent=1 // pred_check_branch
      %44 = sbr.rel (0) target = $region21
    $region20: #{tpu_custom_call.1} parent=1 // pred_region
      _
    $region21: #{tpu_custom_call.1} parent=1 // pred_fallthru
      _
    // Predicated region
    $region22: #{tpu_custom_call.1} parent=1 // pred_check
      _
    $region23: #{tpu_custom_call.1} parent=1 // pred_check_branch
      %46 = sbr.rel (0) target = $region25
    $region24: #{tpu_custom_call.1} parent=1 // pred_region
      %48 = dma.done [#allocation4], 512
    $region25: #{tpu_custom_call.1} parent=1 // pred_fallthru
      _
    // Predicated region
    $region26: #{tpu_custom_call.1} parent=1 // pred_check
      _
    $region27: #{tpu_custom_call.1} parent=1 // pred_check_branch
      %50 = sbr.rel (0) target = $region29
    $region28: #{tpu_custom_call.1} parent=1 // pred_region
      %52 = dma.done [#allocation7], 8192
    $region29: #{tpu_custom_call.1} parent=1 // pred_fallthru
      _
    %p53 = scmp.eq.s32.totalorder 0, 0
    // Predicated region
    $region30: #{tpu_custom_call.1} parent=1 // pred_check
      %p54 = pneg %p53
    $region31: #{tpu_custom_call.1} parent=1 // pred_check_branch
      %56 = sbr.rel (%p54) target = $region33
    $region32: #{tpu_custom_call.1} parent=1 // pred_region
      %57 = vst [vmem:[#allocation2] sm:$0xff] 0.0
      %58 = vst [vmem:[#allocation2 + $0x8] sm:$0xff] 0.0
      %59 = vst [vmem:[#allocation2 + $0x10] sm:$0xff] 0.0
      %60 = vst [vmem:[#allocation2 + $0x18] sm:$0xff] 0.0
    $region33: #{tpu_custom_call.1} parent=1 // pred_fallthru
      _
    %v61 = vld [vmem:[#allocation2] sm:$0xff]
    %v62 = vld [vmem:[#allocation2 + $0x8] sm:$0xff]
    %v63 = vld [vmem:[#allocation2 + $0x10] sm:$0xff]
    %v64 = vld [vmem:[#allocation2 + $0x18] sm:$0xff]
    %v65 = vld [vmem:[#allocation3] sm:$0xff]
    %v66 = vld [vmem:[#allocation3 + $0x8] sm:$0xff]
    %v67 = vld [vmem:[#allocation3 + $0x10] sm:$0xff]
    %v68 = vld [vmem:[#allocation3 + $0x18] sm:$0xff]
    %v69 = vld [vmem:[#allocation6] sm:$0xff]
    %v70 = vld [vmem:[#allocation6 + $0x8] sm:$0xff]
    %v71 = vld [vmem:[#allocation6 + $0x10] sm:$0xff]
    %v72 = vld [vmem:[#allocation6 + $0x18] sm:$0xff]
    %v73 = vld [vmem:[#allocation6 + $0x20] sm:$0xff]
    %v74 = vld [vmem:[#allocation6 + $0x28] sm:$0xff]
    %v75 = vld [vmem:[#allocation6 + $0x30] sm:$0xff]
    %v76 = vld [vmem:[#allocation6 + $0x38] sm:$0xff]
    %v77 = vld [vmem:[#allocation6 + $0x40] sm:$0xff]
    %v78 = vld [vmem:[#allocation6 + $0x48] sm:$0xff]
    %v79 = vld [vmem:[#allocation6 + $0x50] sm:$0xff]
    %v80 = vld [vmem:[#allocation6 + $0x58] sm:$0xff]
    %v81 = vld [vmem:[#allocation6 + $0x60] sm:$0xff]
    %v82 = vld [vmem:[#allocation6 + $0x68] sm:$0xff]
    %v83 = vld [vmem:[#allocation6 + $0x70] sm:$0xff]
    %v84 = vld [vmem:[#allocation6 + $0x78] sm:$0xff]
    %v85 = vld [vmem:[#allocation6 + $0x80] sm:$0xff]
    %v86 = vld [vmem:[#allocation6 + $0x88] sm:$0xff]
    %v87 = vld [vmem:[#allocation6 + $0x90] sm:$0xff]
    %v88 = vld [vmem:[#allocation6 + $0x98] sm:$0xff]
    %v89 = vld [vmem:[#allocation6 + $0xa0] sm:$0xff]
    %v90 = vld [vmem:[#allocation6 + $0xa8] sm:$0xff]
    %v91 = vld [vmem:[#allocation6 + $0xb0] sm:$0xff]
    %v92 = vld [vmem:[#allocation6 + $0xb8] sm:$0xff]
    %v93 = vld [vmem:[#allocation6 + $0xc0] sm:$0xff]
    %v94 = vld [vmem:[#allocation6 + $0xc8] sm:$0xff]
    %v95 = vld [vmem:[#allocation6 + $0xd0] sm:$0xff]
    %v96 = vld [vmem:[#allocation6 + $0xd8] sm:$0xff]
    %v97 = vld [vmem:[#allocation6 + $0xe0] sm:$0xff]
    %v98 = vld [vmem:[#allocation6 + $0xe8] sm:$0xff]
    %v99 = vld [vmem:[#allocation6 + $0xf0] sm:$0xff]
    %v100 = vld [vmem:[#allocation6 + $0xf8] sm:$0xff]
    %v101 = vld [vmem:[#allocation6 + $0x100] sm:$0xff]
    %v102 = vld [vmem:[#allocation6 + $0x108] sm:$0xff]
    %v103 = vld [vmem:[#allocation6 + $0x110] sm:$0xff]
    %v104 = vld [vmem:[#allocation6 + $0x118] sm:$0xff]
    %v105 = vld [vmem:[#allocation6 + $0x120] sm:$0xff]
    %v106 = vld [vmem:[#allocation6 + $0x128] sm:$0xff]
    %v107 = vld [vmem:[#allocation6 + $0x130] sm:$0xff]
    %v108 = vld [vmem:[#allocation6 + $0x138] sm:$0xff]
    %v109 = vld [vmem:[#allocation6 + $0x140] sm:$0xff]
    %v110 = vld [vmem:[#allocation6 + $0x148] sm:$0xff]
    %v111 = vld [vmem:[#allocation6 + $0x150] sm:$0xff]
    %v112 = vld [vmem:[#allocation6 + $0x158] sm:$0xff]
    %v113 = vld [vmem:[#allocation6 + $0x160] sm:$0xff]
    %v114 = vld [vmem:[#allocation6 + $0x168] sm:$0xff]
    %v115 = vld [vmem:[#allocation6 + $0x170] sm:$0xff]
    %v116 = vld [vmem:[#allocation6 + $0x178] sm:$0xff]
    %v117 = vld [vmem:[#allocation6 + $0x180] sm:$0xff]
    %v118 = vld [vmem:[#allocation6 + $0x188] sm:$0xff]
    %v119 = vld [vmem:[#allocation6 + $0x190] sm:$0xff]
    %v120 = vld [vmem:[#allocation6 + $0x198] sm:$0xff]
    %v121 = vld [vmem:[#allocation6 + $0x1a0] sm:$0xff]
    %v122 = vld [vmem:[#allocation6 + $0x1a8] sm:$0xff]
    %v123 = vld [vmem:[#allocation6 + $0x1b0] sm:$0xff]
    %v124 = vld [vmem:[#allocation6 + $0x1b8] sm:$0xff]
    %v125 = vld [vmem:[#allocation6 + $0x1c0] sm:$0xff]
    %v126 = vld [vmem:[#allocation6 + $0x1c8] sm:$0xff]
    %v127 = vld [vmem:[#allocation6 + $0x1d0] sm:$0xff]
    %v128 = vld [vmem:[#allocation6 + $0x1d8] sm:$0xff]
    %v129 = vld [vmem:[#allocation6 + $0x1e0] sm:$0xff]
    %v130 = vld [vmem:[#allocation6 + $0x1e8] sm:$0xff]
    %v131 = vld [vmem:[#allocation6 + $0x1f0] sm:$0xff]
    %v132 = vld [vmem:[#allocation6 + $0x1f8] sm:$0xff]
    %133 = vmatpush.msra.mxu0 %v99
    %134 = vmatpush.msra.mxu0 %v97
    %135 = vmatpush.msra.mxu0 %v95
    %136 = vmatpush.msra.mxu0 %v93
    %137 = vmatpush.msra.mxu0 %v91
    %138 = vmatpush.msra.mxu0 %v89
    %139 = vmatpush.msra.mxu0 %v87
    %140 = vmatpush.msra.mxu0 %v85
    %141 = vmatpush.msra.mxu0 %v83
    %142 = vmatpush.msra.mxu0 %v81
    %143 = vmatpush.msra.mxu0 %v79
    %144 = vmatpush.msra.mxu0 %v77
    %145 = vmatpush.msra.mxu0 %v75
    %146 = vmatpush.msra.mxu0 %v73
    %147 = vmatpush.msra.mxu0 %v71
    %148 = vmatpush.msra.mxu0 %v69
    %149 = vmatmul.f32.gmra.mxu0 %v65
    %v150 = vpop.f32.mrf.mxu0
    %v151 = vadd.f32 0.0, %v150
    %152 = vmatmul.f32.gmra.mxu0 %v67
    %v153 = vpop.f32.mrf.mxu0
    %v154 = vadd.f32 0.0, %v153
    %155 = vdwg.mxu0
    %156 = vmatpush.msra.mxu0 %v131
    %157 = vmatpush.msra.mxu0 %v129
    %158 = vmatpush.msra.mxu0 %v127
    %159 = vmatpush.msra.mxu0 %v125
    %160 = vmatpush.msra.mxu0 %v123
    %161 = vmatpush.msra.mxu0 %v121
    %162 = vmatpush.msra.mxu0 %v119
    %163 = vmatpush.msra.mxu0 %v117
    %164 = vmatpush.msra.mxu0 %v115
    %165 = vmatpush.msra.mxu0 %v113
    %166 = vmatpush.msra.mxu0 %v111
    %167 = vmatpush.msra.mxu0 %v109
    %168 = vmatpush.msra.mxu0 %v107
    %169 = vmatpush.msra.mxu0 %v105
    %170 = vmatpush.msra.mxu0 %v103
    %171 = vmatpush.msra.mxu0 %v101
    %172 = vmatmul.f32.gmra.mxu0 %v66
    %v173 = vpop.f32.mrf.mxu0
    %v174 = vadd.f32 %v151, %v173
    %175 = vmatmul.f32.gmra.mxu0 %v68
    %v176 = vpop.f32.mrf.mxu0
    %v177 = vadd.f32 %v154, %v176
    %178 = vdwg.mxu0
    %179 = vmatpush.msra.mxu0 %v100
    %180 = vmatpush.msra.mxu0 %v98
    %181 = vmatpush.msra.mxu0 %v96
    %182 = vmatpush.msra.mxu0 %v94
    %183 = vmatpush.msra.mxu0 %v92
    %184 = vmatpush.msra.mxu0 %v90
    %185 = vmatpush.msra.mxu0 %v88
    %186 = vmatpush.msra.mxu0 %v86
    %187 = vmatpush.msra.mxu0 %v84
    %188 = vmatpush.msra.mxu0 %v82
    %189 = vmatpush.msra.mxu0 %v80
    %190 = vmatpush.msra.mxu0 %v78
    %191 = vmatpush.msra.mxu0 %v76
    %192 = vmatpush.msra.mxu0 %v74
    %193 = vmatpush.msra.mxu0 %v72
    %194 = vmatpush.msra.mxu0 %v70
    %195 = vmatmul.f32.gmra.mxu0 %v65
    %v196 = vpop.f32.mrf.mxu0
    %v197 = vadd.f32 0.0, %v196
    %198 = vmatmul.f32.gmra.mxu0 %v67
    %v199 = vpop.f32.mrf.mxu0
    %v200 = vadd.f32 0.0, %v199
    %201 = vdwg.mxu0
    %202 = vmatpush.msra.mxu0 %v132
    %203 = vmatpush.msra.mxu0 %v130
    %204 = vmatpush.msra.mxu0 %v128
    %205 = vmatpush.msra.mxu0 %v126
    %206 = vmatpush.msra.mxu0 %v124
    %207 = vmatpush.msra.mxu0 %v122
    %208 = vmatpush.msra.mxu0 %v120
    %209 = vmatpush.msra.mxu0 %v118
    %210 = vmatpush.msra.mxu0 %v116
    %211 = vmatpush.msra.mxu0 %v114
    %212 = vmatpush.msra.mxu0 %v112
    %213 = vmatpush.msra.mxu0 %v110
    %214 = vmatpush.msra.mxu0 %v108
    %215 = vmatpush.msra.mxu0 %v106
    %216 = vmatpush.msra.mxu0 %v104
    %217 = vmatpush.msra.mxu0 %v102
    %218 = vmatmul.f32.gmra.mxu0 %v66
    %v219 = vpop.f32.mrf.mxu0
    %v220 = vadd.f32 %v197, %v219
    %221 = vmatmul.f32.gmra.mxu0 %v68
    %v222 = vpop.f32.mrf.mxu0
    %v223 = vadd.f32 %v200, %v222
    %224 = vdwg.mxu0
    %v225 = vadd.f32 %v61, %v174
    %v226 = vadd.f32 %v62, %v220
    %v227 = vadd.f32 %v63, %v177
    %v228 = vadd.f32 %v64, %v223
    %229 = vst [vmem:[#allocation2] sm:$0xff] %v225
    %230 = vst [vmem:[#allocation2 + $0x8] sm:$0xff] %v226
    %231 = vst [vmem:[#allocation2 + $0x10] sm:$0xff] %v227
    %232 = vst [vmem:[#allocation2 + $0x18] sm:$0xff] %v228
    // Predicated region
    $region34: #{tpu_custom_call.1} parent=1 // pred_check
      %p233 = pneg %p53
    $region35: #{tpu_custom_call.1} parent=1 // pred_check_branch
      %235 = sbr.rel (%p233) target = $region37
    $region36: #{tpu_custom_call.1} parent=1 // pred_region
      %v236 = vld [vmem:[%s3] sm:$0xff]
      %v237 = vld [vmem:[%s3 + $0x8] sm:$0xff]
      %v238 = vld [vmem:[%s4] sm:$0xff]
      %v239 = vld [vmem:[%s4 + $0x8] sm:$0xff]
      %vm240 = vcmask 64512
      %v242 = vsel %vm240, %v236, 0
      %v245 = vsel %vm240, %v237, 0
      %247 = vmatpush.msra.mxu0 0.0
      %248 = vmatpush.msra.mxu0 0.0
      %249 = vmatpush.msra.mxu0 0.0
      %250 = vmatpush.msra.mxu0 0.0
      %251 = vmatpush.msra.mxu0 0.0
      %252 = vmatpush.msra.mxu0 0.0
      %253 = vmatpush.msra.mxu0 0.0
      %254 = vmatpush.msra.mxu0 0.0
      %255 = vmatpush.msra.mxu0 0.0
      %256 = vmatpush.msra.mxu0 0.0
      %257 = vmatpush.msra.mxu0 0.0
      %258 = vmatpush.msra.mxu0 0.0
      %259 = vmatpush.msra.mxu0 0.0
      %260 = vmatpush.msra.mxu0 0.0
      %261 = vmatpush.msra.mxu0 0.0
      %262 = vmatpush.msra.mxu0 %v238
      %263 = vmatmul.f32.gmra.mxu0 %v242
      %v264 = vpop.f32.mrf.mxu0
      %v265 = vadd.f32 0.0, %v264
      %266 = vmatmul.f32.gmra.mxu0 %v245
      %v267 = vpop.f32.mrf.mxu0
      %v268 = vadd.f32 0.0, %v267
      %269 = vdwg.mxu0
      %270 = vmatpush.msra.mxu0 0.0
      %271 = vmatpush.msra.mxu0 0.0
      %272 = vmatpush.msra.mxu0 0.0
      %273 = vmatpush.msra.mxu0 0.0
      %274 = vmatpush.msra.mxu0 0.0
      %275 = vmatpush.msra.mxu0 0.0
      %276 = vmatpush.msra.mxu0 0.0
      %277 = vmatpush.msra.mxu0 0.0
      %278 = vmatpush.msra.mxu0 0.0
      %279 = vmatpush.msra.mxu0 0.0
      %280 = vmatpush.msra.mxu0 0.0
      %281 = vmatpush.msra.mxu0 0.0
      %282 = vmatpush.msra.mxu0 0.0
      %283 = vmatpush.msra.mxu0 0.0
      %284 = vmatpush.msra.mxu0 0.0
      %285 = vmatpush.msra.mxu0 %v239
      %286 = vmatmul.f32.gmra.mxu0 %v242
      %v287 = vpop.f32.mrf.mxu0
      %v288 = vadd.f32 0.0, %v287
      %289 = vmatmul.f32.gmra.mxu0 %v245
      %v290 = vpop.f32.mrf.mxu0
      %v291 = vadd.f32 0.0, %v290
      %292 = vdwg.mxu0
      %v293 = vld [vmem:[#allocation2] sm:$0xff]
      %v294 = vld [vmem:[#allocation2 + $0x8] sm:$0xff]
      %v295 = vld [vmem:[#allocation2 + $0x10] sm:$0xff]
      %v296 = vld [vmem:[#allocation2 + $0x18] sm:$0xff]
      %v297 = vld [vmem:[%s2] sm:$0x3]
      %v299 = vperm.slane %v297, 0
      %v300 = vperm.slane %v297, 1
      %v303 = vadd.f32 %v293, %v299
      %v304 = vadd.f32 %v294, %v300
      %v305 = vadd.f32 %v295, %v299
      %v306 = vadd.f32 %v296, %v300
      %v307 = vadd.f32 %v303, %v265
      %v308 = vadd.f32 %v304, %v288
      %v309 = vadd.f32 %v305, %v268
      %v310 = vadd.f32 %v306, %v291
      %311 = vst [vmem:[#allocation8] sm:$0xff] %v307
      %312 = vst [vmem:[#allocation8 + $0x8] sm:$0xff] %v308
      %313 = vst [vmem:[#allocation8 + $0x10] sm:$0xff] %v309
      %314 = vst [vmem:[#allocation8 + $0x18] sm:$0xff] %v310
    $region37: #{tpu_custom_call.1} parent=1 // pred_fallthru
      _
    // Predicated region
    $region38: #{tpu_custom_call.1} parent=1 // pred_check
      _
    $region39: #{tpu_custom_call.1} parent=1 // pred_check_branch
      %316 = sbr.rel (0) target = $region41
    $region40: #{tpu_custom_call.1} parent=1 // pred_region
      %318 = vsyncadd [#allocation5], 0
      %s319 = sshll.u32 [#allocation8], 4
      %s320 = int_to_ptr.vmem [resolvable:$true] %s319
      %s321 = sshll.u32 %s5, 4
      %s322 = int_to_ptr.hbm [resolvable:$true] %s321
      %327 = dma.vmem_to_hbm [thread:$0]  %s320, 512, %s322, [#allocation5], 256, 256, 16
    $region41: #{tpu_custom_call.1} parent=1 // pred_fallthru
      _
    // Predicated region
    $region42: #{tpu_custom_call.1} parent=1 // pred_check
      _
    $region43: #{tpu_custom_call.1} parent=1 // pred_check_branch
      %329 = sbr.rel (0) target = $region45
    $region44: #{tpu_custom_call.1} parent=1 // pred_region
      %331 = dma.done [#allocation5], 512
    $region45: #{tpu_custom_call.1} parent=1 // pred_fallthru
      _
    %332 = vsyncpa [#allocation4], 1
    %333 = vsyncpa [#allocation7], 1
    %334 = vsyncpa [#allocation5], 1

</llo_original>
